<compile_context>
chip_gen: v6e
topology: v6e:2x2x1
jax: 0.10.0
libtpu: 0.0.40
codegen_flags: <defaults>
</compile_context>

<pallas_src>
import jax
import jax.numpy as jnp
from jax.experimental import pallas as pl
from jax.experimental.pallas import tpu as pltpu

_SUBLANE = 8
_LANE = 128


def _round_up(a, m):
    return -(-a // m) * m


def _budgets():
    """(input-block target bytes, per-chunk f32 budget bytes, vmem limit bytes)."""
    try:
        vmem_cap = int(pltpu.get_tpu_info().vmem_capacity_bytes)
    except Exception:
        vmem_cap = 0                        # unknown -> conservative (v7x-safe)
    if vmem_cap >= 100 * (1 << 20):         # v5e / v6e: 128 MiB VMEM
        return 12 << 20, 1 << 20, 80 << 20
    return 8 << 20, 1 << 20, 48 << 20       # v7x (64 MiB) or unknown


def _pick_tiling(nc, L, itemsize, block_target, chunk_budget):
    """tile = planes per grid step (HBM DMA unit); chunk = planes per inner iter."""
    if nc <= _SUBLANE:
        tile = nc                           # single block == full array dims
        chunk = 1
        for cand in range(tile, 0, -1):     # largest divisor within the budget
            if tile % cand == 0 and cand * L * 4 <= max(chunk_budget, L * 4):
                chunk = cand
                break
    else:
        chunk = _SUBLANE                    # power of two <= 8 (divides 8)
        while chunk > 1 and chunk * L * 4 > chunk_budget:
            chunk //= 2
        planes = max(_SUBLANE,
                     (block_target // max(1, L * itemsize)) // _SUBLANE * _SUBLANE)
        tile = min(planes, _round_up(nc, _SUBLANE))
        if -(-nc // tile) < 2:              # >=2 blocks so v7x can split across TCs
            tile = _round_up(-(-nc // 2), _SUBLANE)
    num_blocks = -(-nc // tile)
    return tile, chunk, num_blocks


def _make_kernel(nc, w, L, tile, chunk, has_tail, h_leq2, L_leq2):
    n_chunks = tile // chunk
    shift_w = (L - 1) % L                   # "+1" neighbour along the flat axis
    shift_h = (L - w) % L                   # "+w" neighbour (next image row)

    def kernel(cir_ref, x_ref, h_ref, w_ref):
        # ---- per-step position masks (data independent, ~L/128 vregs) ----
        cir = cir_ref[...]                                     # (1, L) = col % w
        col = jax.lax.broadcasted_iota(jnp.int32, (1, L), 1)   # flat position
        col_w = pltpu.roll(col, shift_w, 1)
        col_h = pltpu.roll(col, shift_h, 1)
        # Position p contributes iff the element rolled into p is its flat +/-1
        # (same image row) resp. +/-w neighbour.  Comparing against the rolled
        # iota makes this correct for either roll direction; when the two
        # directions coincide (h<=2 resp. L<=2) keep only the "+" clause so no
        # pair is counted twice.
        fwd_w = (col_w == col + 1) & (cir != w - 1)
        fwd_h = (col_h == col + w)
        valid_w = fwd_w if L_leq2 else (fwd_w | ((col_w == col - 1) & (cir != 0)))
        valid_h = fwd_h if h_leq2 else (fwd_h | (col_h == col - w))

        base = pl.program_id(0) * tile

        def contrib(start):
            xb = x_ref[pl.ds(start, chunk), :].astype(jnp.float32)   # (chunk, L)
            dh = pltpu.roll(xb, shift_h, 1) - xb
            dw = pltpu.roll(xb, shift_w, 1) - xb
            vh, vw = valid_h, valid_w
            if has_tail:                     # mask planes beyond nc (tail block)
                row = jax.lax.broadcasted_iota(jnp.int32, (chunk, 1), 0)
                ok = (base + start + row) < nc
                vh = vh & ok
                vw = vw & ok
            ph = jnp.sum(jnp.where(vh, dh * dh, 0.0), keepdims=True)  # (1, 1)
            pw = jnp.sum(jnp.where(vw, dw * dw, 0.0), keepdims=True)
            return ph, pw

        acc_h = jnp.zeros((1, 1), jnp.float32)
        acc_w = jnp.zeros((1, 1), jnp.float32)
        if n_chunks <= 8:                    # short fixed trip count: unroll
            for ci in range(n_chunks):
                ph, pw = contrib(ci * chunk)
                acc_h += ph
                acc_w += pw
        else:
            def body(ci, carry):
                ah, aw = carry
                ph, pw = contrib(pl.multiple_of(ci * chunk, chunk))
                return ah + ph, aw + pw
            acc_h, acc_w = jax.lax.fori_loop(0, n_chunks, body, (acc_h, acc_w))

        # Lane/sublane-aligned, unmasked (8,128) stores; wrapper reads [0, 0].
        h_ref[0] = jnp.broadcast_to(acc_h, (_SUBLANE, _LANE))
        w_ref[0] = jnp.broadcast_to(acc_w, (_SUBLANE, _LANE))

    return kernel


@jax.jit
def tv_loss(x, tv_loss_weight=0.01):
    """Pallas-TPU equivalent of TVLoss.forward for an NCHW input."""
    n, c, h, w = x.shape
    nc = n * c
    L = h * w

    x_flat = x.reshape(nc, L)                                  # free reshape
    cir = (jnp.arange(L, dtype=jnp.int32) % w).reshape(1, L)   # column-in-row

    block_target, chunk_budget, vmem_limit = _budgets()
    tile, chunk, num_blocks = _pick_tiling(nc, L, x.dtype.itemsize,
                                           block_target, chunk_budget)
    has_tail = num_blocks * tile != nc

    # TODO(synk): tile within a plane (split H with a one-row seam pass) so a
    # single very large H*W plane does not have to fit whole in VMEM.
    kernel = _make_kernel(nc, w, L, tile, chunk, has_tail,
                          h_leq2=(h <= 2), L_leq2=(L <= 2))

    h_part, w_part = pl.pallas_call(
        kernel,
        out_shape=(
            jax.ShapeDtypeStruct((num_blocks, _SUBLANE, _LANE), jnp.float32),
            jax.ShapeDtypeStruct((num_blocks, _SUBLANE, _LANE), jnp.float32),
        ),
        grid_spec=pltpu.PrefetchScalarGridSpec(
            num_scalar_prefetch=0,
            grid=(num_blocks,),
            in_specs=[
                pl.BlockSpec((1, L), lambda i: (0, 0)),        # cir (tiny aux)
                pl.BlockSpec((tile, L), lambda i: (i, 0)),     # input planes
            ],
            out_specs=[
                pl.BlockSpec((1, _SUBLANE, _LANE), lambda i: (i, 0, 0)),
                pl.BlockSpec((1, _SUBLANE, _LANE), lambda i: (i, 0, 0)),
            ],
        ),
        compiler_params=pltpu.CompilerParams(
            dimension_semantics=("parallel",),
            vmem_limit_bytes=vmem_limit,
        ),
    )(cir, x_flat)

    # Tiny final reduction over per-block partials (plain JAX).
    h_tv = jnp.sum(h_part[:, 0, 0])
    w_tv = jnp.sum(w_part[:, 0, 0])

    # Same counts (and same h==1 / w==1 divide-by-zero) as the PyTorch module.
    count_h = c * (h - 1) * w        # tensor_size(x[:, :, 1:, :])
    count_w = c * h * (w - 1)        # tensor_size(x[:, :, :, 1:])
    return tv_loss_weight * 2.0 * (h_tv / count_h + w_tv / count_w) / n


if __name__ == "__main__":
    key = jax.random.PRNGKey(0)
    x = jax.random.normal(key, (2, 4, 16, 16), dtype=jnp.float32)

    out = tv_loss(x, tv_loss_weight=0.01)
    out = jax.block_until_ready(out)

    # Pure-JAX reference (same math as the PyTorch module).
    h_tv_ref = jnp.sum((x[:, :, 1:, :] - x[:, :, :-1, :]) ** 2)
    w_tv_ref = jnp.sum((x[:, :, :, 1:] - x[:, :, :, :-1]) ** 2)
    count_h = x.shape[1] * (x.shape[2] - 1) * x.shape[3]
    count_w = x.shape[1] * x.shape[2] * (x.shape[3] - 1)
    ref = 0.01 * 2.0 * (h_tv_ref / count_h + w_tv_ref / count_w) / x.shape[0]

    assert jnp.allclose(out, ref, rtol=1e-5, atol=1e-6), (out, ref)
    print("KERNEL_OK")
</pallas_src>

<mosaic_0001>
module attributes {stable_mosaic.version = 11 : i64} {
  func.func @kernel(%arg0: i32, %arg1: memref<1x256xi32, #tpu.memory_space<vmem>>, %arg2: memref<8x256xf32, #tpu.memory_space<vmem>>, %arg3: memref<1x8x128xf32, #tpu.memory_space<vmem>>, %arg4: memref<1x8x128xf32, #tpu.memory_space<vmem>>) attributes {dimension_semantics = [#tpu.dimension_semantics<parallel>], iteration_bounds = array<i64: 1>, scalar_prefetch = 0 : i64, scratch_operands = 0 : i64, tpu.core_type = #tpu.core_type<tc>, window_params = [{pipeline_mode = #tpu.pipeline_mode<synchronous>, transform_indices = @transform_0, window_bounds = array<i64: 1, 256>}, {transform_indices = @transform_1, window_bounds = array<i64: 8, 256>}, {transform_indices = @transform_2, window_bounds = array<i64: 1, 8, 128>}, {transform_indices = @transform_3, window_bounds = array<i64: 1, 8, 128>}]} {
    %c0 = arith.constant 0 : index
    %c0_0 = arith.constant 0 : index
    %0 = vector.load %arg1[%c0, %c0_0] : memref<1x256xi32, #tpu.memory_space<vmem>>, vector<1x256xi32>
    %1 = tpu.iota {dimensions = array<i32: 1>} : vector<1x256xi32>
    %c255_i32 = arith.constant 255 : i32
    %2 = tpu.dynamic_rotate %1 by %c255_i32 dim 1 : vector<1x256xi32>, i32 -> vector<1x256xi32>
    %c240_i32 = arith.constant 240 : i32
    %3 = tpu.dynamic_rotate %1 by %c240_i32 dim 1 : vector<1x256xi32>, i32 -> vector<1x256xi32>
    %c1_i32 = arith.constant 1 : i32
    %4 = vector.broadcast %c1_i32 : i32 to vector<1x256xi32>
    %5 = arith.addi %1, %4 : vector<1x256xi32>
    %6 = arith.cmpi eq, %2, %5 : vector<1x256xi32>
    %c15_i32 = arith.constant 15 : i32
    %7 = vector.broadcast %c15_i32 : i32 to vector<1x256xi32>
    %8 = arith.cmpi ne, %0, %7 : vector<1x256xi32>
    %9 = arith.andi %6, %8 : vector<1x256xi1>
    %c16_i32 = arith.constant 16 : i32
    %10 = vector.broadcast %c16_i32 : i32 to vector<1x256xi32>
    %11 = arith.addi %1, %10 : vector<1x256xi32>
    %12 = arith.cmpi eq, %3, %11 : vector<1x256xi32>
    %c1_i32_1 = arith.constant 1 : i32
    %13 = vector.broadcast %c1_i32_1 : i32 to vector<1x256xi32>
    %14 = arith.subi %1, %13 : vector<1x256xi32>
    %15 = arith.cmpi eq, %2, %14 : vector<1x256xi32>
    %c0_i32 = arith.constant 0 : i32
    %16 = vector.broadcast %c0_i32 : i32 to vector<1x256xi32>
    %17 = arith.cmpi ne, %0, %16 : vector<1x256xi32>
    %18 = arith.andi %15, %17 : vector<1x256xi1>
    %19 = arith.ori %9, %18 : vector<1x256xi1>
    %c16_i32_2 = arith.constant 16 : i32
    %20 = vector.broadcast %c16_i32_2 : i32 to vector<1x256xi32>
    %21 = arith.subi %1, %20 : vector<1x256xi32>
    %22 = arith.cmpi eq, %3, %21 : vector<1x256xi32>
    %23 = arith.ori %12, %22 : vector<1x256xi1>
    %cst = arith.constant 0.000000e+00 : f32
    %24 = vector.broadcast %cst : f32 to vector<1x1xf32>
    %cst_3 = arith.constant 0.000000e+00 : f32
    %25 = vector.broadcast %cst_3 : f32 to vector<1x1xf32>
    %c0_4 = arith.constant 0 : index
    %c0_5 = arith.constant 0 : index
    %26 = vector.load %arg2[%c0_4, %c0_5] : memref<8x256xf32, #tpu.memory_space<vmem>>, vector<8x256xf32>
    %c240_i32_6 = arith.constant 240 : i32
    %27 = tpu.dynamic_rotate %26 by %c240_i32_6 dim 1 : vector<8x256xf32>, i32 -> vector<8x256xf32>
    %28 = arith.subf %27, %26 : vector<8x256xf32>
    %c255_i32_7 = arith.constant 255 : i32
    %29 = tpu.dynamic_rotate %26 by %c255_i32_7 dim 1 : vector<8x256xf32>, i32 -> vector<8x256xf32>
    %30 = arith.subf %29, %26 : vector<8x256xf32>
    %31 = arith.mulf %28, %28 : vector<8x256xf32>
    %cst_8 = arith.constant 0.000000e+00 : f32
    %32 = vector.shape_cast %23 : vector<1x256xi1> to vector<1x256xi1>
    %33 = vector.broadcast %32 : vector<1x256xi1> to vector<8x256xi1>
    %34 = vector.broadcast %cst_8 : f32 to vector<8x256xf32>
    %35 = arith.select %33, %31, %34 : vector<8x256xi1>, vector<8x256xf32>
    %36 = vector.shape_cast %35 : vector<8x256xf32> to vector<1x8x256xf32>
    %cst_9 = arith.constant dense<0.000000e+00> : vector<1xf32>
    %37 = vector.multi_reduction <add>, %36, %cst_9 [1, 2] : vector<1x8x256xf32> to vector<1xf32>
    %38 = vector.shape_cast %37 : vector<1xf32> to vector<1x1x1xf32>
    %39 = vector.extract %38[0, 0, 0] : f32 from vector<1x1x1xf32>
    %40 = vector.broadcast %39 : f32 to vector<1x1xf32>
    %41 = arith.mulf %30, %30 : vector<8x256xf32>
    %cst_10 = arith.constant 0.000000e+00 : f32
    %42 = vector.shape_cast %19 : vector<1x256xi1> to vector<1x256xi1>
    %43 = vector.broadcast %42 : vector<1x256xi1> to vector<8x256xi1>
    %44 = vector.broadcast %cst_10 : f32 to vector<8x256xf32>
    %45 = arith.select %43, %41, %44 : vector<8x256xi1>, vector<8x256xf32>
    %46 = vector.shape_cast %45 : vector<8x256xf32> to vector<1x8x256xf32>
    %cst_11 = arith.constant dense<0.000000e+00> : vector<1xf32>
    %47 = vector.multi_reduction <add>, %46, %cst_11 [1, 2] : vector<1x8x256xf32> to vector<1xf32>
    %48 = vector.shape_cast %47 : vector<1xf32> to vector<1x1x1xf32>
    %49 = vector.extract %48[0, 0, 0] : f32 from vector<1x1x1xf32>
    %50 = vector.broadcast %49 : f32 to vector<1x1xf32>
    %51 = arith.addf %24, %40 : vector<1x1xf32>
    %52 = arith.addf %25, %50 : vector<1x1xf32>
    %53 = vector.shape_cast %51 : vector<1x1xf32> to vector<1x1xf32>
    %54 = vector.broadcast %53 : vector<1x1xf32> to vector<8x128xf32>
    %c0_12 = arith.constant 0 : index
    %c0_13 = arith.constant 0 : index
    %c0_14 = arith.constant 0 : index
    %55 = vector.load %arg3[%c0_12, %c0_13, %c0_14] : memref<1x8x128xf32, #tpu.memory_space<vmem>>, vector<1x8x128xf32>
    %56 = vector.shape_cast %55 : vector<1x8x128xf32> to vector<8x128xf32>
    %57 = vector.shape_cast %54 : vector<8x128xf32> to vector<1x8x128xf32>
    tpu.vector_store %arg3[%c0_12, %c0_13, %c0_14], %57 {strides = array<i32>} : memref<1x8x128xf32, #tpu.memory_space<vmem>>, vector<1x8x128xf32>,
    %58 = vector.shape_cast %52 : vector<1x1xf32> to vector<1x1xf32>
    %59 = vector.broadcast %58 : vector<1x1xf32> to vector<8x128xf32>
    %c0_15 = arith.constant 0 : index
    %c0_16 = arith.constant 0 : index
    %c0_17 = arith.constant 0 : index
    %60 = vector.load %arg4[%c0_15, %c0_16, %c0_17] : memref<1x8x128xf32, #tpu.memory_space<vmem>>, vector<1x8x128xf32>
    %61 = vector.shape_cast %60 : vector<1x8x128xf32> to vector<8x128xf32>
    %62 = vector.shape_cast %59 : vector<8x128xf32> to vector<1x8x128xf32>
    tpu.vector_store %arg4[%c0_15, %c0_16, %c0_17], %62 {strides = array<i32>} : memref<1x8x128xf32, #tpu.memory_space<vmem>>, vector<1x8x128xf32>,
    return
  }
  func.func @transform_0(%arg0: i32) -> (i32, i32) {
    %c0_i32 = arith.constant 0 : i32
    %c0_i32_0 = arith.constant 0 : i32
    %c0_i32_1 = arith.constant 0 : i32
    return %c0_i32, %c0_i32_0 : i32, i32
  }
  func.func @transform_1(%arg0: i32) -> (i32, i32) {
    %c0_i32 = arith.constant 0 : i32
    %c0_i32_0 = arith.constant 0 : i32
    return %arg0, %c0_i32 : i32, i32
  }
  func.func @transform_2(%arg0: i32) -> (i32, i32, i32) {
    %c0_i32 = arith.constant 0 : i32
    %c0_i32_0 = arith.constant 0 : i32
    %c0_i32_1 = arith.constant 0 : i32
    return %arg0, %c0_i32, %c0_i32_0 : i32, i32, i32
  }
  func.func @transform_3(%arg0: i32) -> (i32, i32, i32) {
    %c0_i32 = arith.constant 0 : i32
    %c0_i32_0 = arith.constant 0 : i32
    %c0_i32_1 = arith.constant 0 : i32
    return %arg0, %c0_i32, %c0_i32_0 : i32, i32, i32
  }
}

</mosaic_0001>

<llo_original>
// kernel: tv_loss.1
$region0: #{tv_loss.1}
  #allocation0 [shape = 'u32[]', space=smem, size = 0x4, offset = 0x4, fixed_abs, tag = 'smem constant byte address 0x4 - core index']
  #allocation1 [shape = 'u32[144,128]{1,0:T(1,128)}', space=vmem, size = 0x12000, scoped, tag = 'internal scratch']
  %s0 = inlined_call_operand.vmem [shape: s32[1,256], index: 0, kind: input, shape index: {}]
  %s1 = inlined_call_operand.vmem [shape: f32[8,256], index: 1, kind: input, shape index: {}]
  %s2 = inlined_call_operand.vmem [shape: f32[1,8,128], index: 2, kind: output, shape index: {0}]
  %s3 = inlined_call_operand.vmem [shape: f32[1,8,128], index: 3, kind: output, shape index: {1}]
  %4 = xla_tuple %s2, %s3
  %s5 = sld [smem:[#allocation0]]
  $region26: #{tv_loss.1} parent=0
    _
  %s7 = ssub.s32 1, %s5
  %s8 = scalar_select 0, %s7, %s5
  // Predicated region
  $region2: #{tv_loss.1} parent=0 // pred_check
    _
  $region3: #{tv_loss.1} parent=0 // pred_check_branch
    %10 = sbr.rel (0) target = $region5
  $region4: #{tv_loss.1} parent=0 // pred_region
    _
  $region5: #{tv_loss.1} parent=0 // pred_fallthru
    _
  // Predicated region
  $region6: #{tv_loss.1} parent=0 // pred_check
    _
  $region7: #{tv_loss.1} parent=0 // pred_check_branch
    %12 = sbr.rel (0) target = $region9
  $region8: #{tv_loss.1} parent=0 // pred_region
    _
  $region9: #{tv_loss.1} parent=0 // pred_fallthru
    _
  %v13 = vld [vmem:[%s0] sm:$0x3]
  %v14 = vlaneseq
  %v15 = vand.u32 %v14, 127
  %v16 = vadd.s32 %v15, 128
  %17 = vrot.lane.b32.xlu0 %v15, 127
  %v18 = vpop.permute.xlu0 %17
  %19 = vrot.lane.b32.xlu0 %v16, 127
  %v20 = vpop.permute.xlu0 %19
  %vm21 = vcmp.lt.s32.totalorder %v15, 127
  %v22 = vsel %vm21, %v18, %v20
  %v23 = vsel %vm21, %v20, %v18
  %24 = vrot.lane.b32.xlu0 %v15, 112
  %v25 = vpop.permute.xlu0 %24
  %26 = vrot.lane.b32.xlu0 %v16, 112
  %v27 = vpop.permute.xlu0 %26
  %vm28 = vcmp.lt.s32.totalorder %v15, 112
  %v29 = vsel %vm28, %v25, %v27
  %v30 = vsel %vm28, %v27, %v25
  %v31 = vadd.s32 %v15, 1
  %v32 = vadd.s32 %v16, 1
  %vm33 = vcmp.eq.s32.totalorder %v22, %v31
  %vm34 = vcmp.eq.s32.totalorder %v23, %v32
  %vm35 = vcmp.ne.s32.totalorder %v13, 15
  %v36 = vsel %vm35, 1, 0
  %v37 = vlaneseq
  %v38 = vshrl.u32 %v37, 7
  %v39 = vsub.s32 0, %v38
  %v40 = vrot.slane %v36, %v39
  %v41 = vlaneseq
  %v42 = vshrl.u32 %v41, 7
  %v43 = vsub.s32 1, %v42
  %v44 = vrot.slane %v36, %v43
  %vm45 = vcmp.ne.s32.totalorder %v40, 0
  %vm46 = vcmp.ne.s32.totalorder %v44, 0
  %vm47 = vmand %vm33, %vm45
  %vm48 = vmand %vm34, %vm46
  %v49 = vadd.s32 %v15, 16
  %v50 = vadd.s32 %v16, 16
  %vm51 = vcmp.eq.s32.totalorder %v29, %v49
  %vm52 = vcmp.eq.s32.totalorder %v30, %v50
  %v53 = vsub.s32 %v15, 1
  %v54 = vsub.s32 %v16, 1
  %vm55 = vcmp.eq.s32.totalorder %v22, %v53
  %vm56 = vcmp.eq.s32.totalorder %v23, %v54
  %vm57 = vcmp.ne.s32.totalorder %v13, 0
  %v58 = vsel %vm57, 1, 0
  %v59 = vlaneseq
  %v60 = vshrl.u32 %v59, 7
  %v61 = vsub.s32 0, %v60
  %v62 = vrot.slane %v58, %v61
  %v63 = vlaneseq
  %v64 = vshrl.u32 %v63, 7
  %v65 = vsub.s32 1, %v64
  %v66 = vrot.slane %v58, %v65
  %vm67 = vcmp.ne.s32.totalorder %v62, 0
  %vm68 = vcmp.ne.s32.totalorder %v66, 0
  %vm69 = vmand %vm55, %vm67
  %vm70 = vmand %vm56, %vm68
  %vm71 = vmor %vm47, %vm69
  %vm72 = vmor %vm48, %vm70
  %v73 = vsub.s32 %v15, 16
  %v74 = vsub.s32 %v16, 16
  %vm75 = vcmp.eq.s32.totalorder %v29, %v73
  %vm76 = vcmp.eq.s32.totalorder %v30, %v74
  %vm77 = vmor %vm51, %vm75
  %vm78 = vmor %vm52, %vm76
  %v79 = vld [vmem:[%s1] sm:$0xff]
  %v80 = vld [vmem:[%s1 + $0x8] sm:$0xff]
  %81 = vrot.lane.b32.xlu0 %v79, 112
  %v82 = vpop.permute.xlu0 %81
  %83 = vrot.lane.b32.xlu0 %v80, 112
  %v84 = vpop.permute.xlu0 %83
  %v85 = vsel %vm28, %v82, %v84
  %v86 = vsel %vm28, %v84, %v82
  %v87 = vsub.f32 %v85, %v79
  %v88 = vsub.f32 %v86, %v80
  %89 = vrot.lane.b32.xlu0 %v79, 127
  %v90 = vpop.permute.xlu0 %89
  %91 = vrot.lane.b32.xlu0 %v80, 127
  %v92 = vpop.permute.xlu0 %91
  %v93 = vsel %vm21, %v90, %v92
  %v94 = vsel %vm21, %v92, %v90
  %v95 = vsub.f32 %v93, %v79
  %v96 = vsub.f32 %v94, %v80
  %v97 = vmul.f32 %v87, %v87
  %v98 = vmul.f32 %v88, %v88
  %v99 = vsel %vm77, 1, 0
  %v100 = vsel %vm78, 1, 0
  %v101 = vlaneseq
  %v102 = vshrl.u32 %v101, 7
  %v103 = vsub.s32 0, %v102
  %v104 = vrot.slane %v99, %v103
  %v105 = vlaneseq
  %v106 = vshrl.u32 %v105, 7
  %v107 = vsub.s32 0, %v106
  %v108 = vrot.slane %v100, %v107
  %vm109 = vcmp.eq.s32.totalorder %v104, 1
  %vm110 = vcmp.eq.s32.totalorder %v108, 1
  %v111 = vsel %vm109, %v97, 0.0
  %v112 = vsel %vm110, %v98, 0.0
  %v113 = vadd.f32 %v111, %v112
  %114 = vadd.xlane.f32.xlu0 %v113
  %v115 = vpop.xlane.xlu0 %114
  %v116 = vrot.slane %v115, 4
  %v117 = vadd.f32 %v115, %v116
  %v118 = vrot.slane %v117, 2
  %v119 = vadd.f32 %v117, %v118
  %v120 = vrot.slane %v119, 1
  %v121 = vadd.f32 %v119, %v120
  %s122 = vtos %v121
  %v123 = vstv %s122
  %v124 = vmul.f32 %v95, %v95
  %v125 = vmul.f32 %v96, %v96
  %v126 = vsel %vm71, 1, 0
  %v127 = vsel %vm72, 1, 0
  %v128 = vlaneseq
  %v129 = vshrl.u32 %v128, 7
  %v130 = vsub.s32 0, %v129
  %v131 = vrot.slane %v126, %v130
  %v132 = vlaneseq
  %v133 = vshrl.u32 %v132, 7
  %v134 = vsub.s32 0, %v133
  %v135 = vrot.slane %v127, %v134
  %vm136 = vcmp.eq.s32.totalorder %v131, 1
  %vm137 = vcmp.eq.s32.totalorder %v135, 1
  %v138 = vsel %vm136, %v124, 0.0
  %v139 = vsel %vm137, %v125, 0.0
  %v140 = vadd.f32 %v138, %v139
  %141 = vadd.xlane.f32.xlu0 %v140
  %v142 = vpop.xlane.xlu0 %141
  %v143 = vrot.slane %v142, 4
  %v144 = vadd.f32 %v142, %v143
  %v145 = vrot.slane %v144, 2
  %v146 = vadd.f32 %v144, %v145
  %v147 = vrot.slane %v146, 1
  %v148 = vadd.f32 %v146, %v147
  %s149 = vtos %v148
  %v150 = vstv %s149
  %v151 = vadd.f32 %v123, 0.0
  %v152 = vadd.f32 %v150, 0.0
  %153 = vst [vmem:[%s2] sm:$0xff] %v151
  %154 = vst [vmem:[%s3] sm:$0xff] %v152
  // Predicated region
  $region10: #{tv_loss.1} parent=0 // pred_check
    _
  $region11: #{tv_loss.1} parent=0 // pred_check_branch
    %156 = sbr.rel (0) target = $region13
  $region12: #{tv_loss.1} parent=0 // pred_region
    _
  $region13: #{tv_loss.1} parent=0 // pred_fallthru
    _
  // Predicated region
  $region14: #{tv_loss.1} parent=0 // pred_check
    _
  $region15: #{tv_loss.1} parent=0 // pred_check_branch
    %158 = sbr.rel (0) target = $region17
  $region16: #{tv_loss.1} parent=0 // pred_region
    _
  $region17: #{tv_loss.1} parent=0 // pred_fallthru
    _
  // Predicated region
  $region18: #{tv_loss.1} parent=0 // pred_check
    _
  $region19: #{tv_loss.1} parent=0 // pred_check_branch
    %160 = sbr.rel (0) target = $region21
  $region20: #{tv_loss.1} parent=0 // pred_region
    _
  $region21: #{tv_loss.1} parent=0 // pred_fallthru
    _
  // Predicated region
  $region22: #{tv_loss.1} parent=0 // pred_check
    _
  $region23: #{tv_loss.1} parent=0 // pred_check_branch
    %162 = sbr.rel (0) target = $region25
  $region24: #{tv_loss.1} parent=0 // pred_region
    _
  $region25: #{tv_loss.1} parent=0 // pred_fallthru
    _

</llo_original>
